<compile_context>
chip_gen: v7x
topology: tpu7x:2x2x1
jax: 0.10.0
libtpu: 0.0.40
codegen_flags: <defaults>
</compile_context>

<pallas_src>
import functools

import jax
import jax.numpy as jnp
from jax.experimental import pallas as pl
from jax.experimental.pallas import tpu as pltpu


def _make_smooth_kernel(kernel_size: int, l_out: int):
    """Kernel computing a stride-1 moving average of width `kernel_size`."""
    inv_k = 1.0 / float(kernel_size)

    def kernel(x_ref, o_ref):
        # Sum the k shifted views of the resident (TB, L) tile.
        acc = x_ref[:, 0:l_out].astype(jnp.float32)
        for j in range(1, kernel_size):
            acc = acc + x_ref[:, j:j + l_out].astype(jnp.float32)
        o_ref[...] = (acc * inv_k).astype(o_ref.dtype)

    return kernel


def _choose_batch_tile(batch, seq_len, l_out, itemsize,
                       budget_bytes=8 * 1024 * 1024):
    """Largest multiple-of-8 row tile whose double-buffered footprint fits."""
    per_row = (seq_len + l_out) * itemsize          # one input + one output row
    tb = budget_bytes // (2 * per_row)              # x2: pipeline double-buffer
    tb = max(8, (tb // 8) * 8)
    return batch if tb >= batch else tb


@functools.partial(jax.jit, static_argnames=("kernel_size", "tb"))
def smooth(x, kernel_size: int, tb=None):
    """Pallas implementation of Smooth(kernel_size).forward(x)."""
    assert x.ndim == 2
    B, L = x.shape
    l_out = L - kernel_size + 1
    assert l_out >= 1, "kernel_size must be <= sequence length"

    itemsize = jnp.dtype(x.dtype).itemsize
    if tb is None:
        tb = _choose_batch_tile(B, L, l_out, itemsize)
    tb = min(tb, B)

    grid = (pl.cdiv(B, tb),)
    kernel = _make_smooth_kernel(kernel_size, l_out)

    return pl.pallas_call(
        kernel,
        out_shape=jax.ShapeDtypeStruct((B, l_out), x.dtype),
        grid=grid,
        in_specs=[pl.BlockSpec((tb, L), lambda i: (i, 0))],
        out_specs=pl.BlockSpec((tb, l_out), lambda i: (i, 0)),
        compiler_params=pltpu.CompilerParams(
            dimension_semantics=("parallel",)),
    )(x)


def _reference(x, kernel_size):
    B, L = x.shape
    l_out = L - kernel_size + 1
    windows = jnp.stack([x[:, j:j + l_out] for j in range(kernel_size)], axis=0)
    return jnp.mean(windows, axis=0)


if __name__ == "__main__":
    key = jax.random.PRNGKey(0)
    k1, k2 = jax.random.split(key)

    # Small shape consistent with the module: (batch, seq), kernel_size=5.
    B, L, ksize = 4, 64, 5
    x = jax.random.normal(k1, (B, L), dtype=jnp.float32)
    out = jax.block_until_ready(smooth(x, ksize))
    ref = _reference(x, ksize)
    assert out.shape == (B, L - ksize + 1), out.shape
    assert jnp.allclose(out, ref, rtol=1e-6, atol=1e-6)

    # Exercise the multi-block (gridded, pipelined) batch path as well.
    B2, L2, k2size = 32, 256, 7
    x2 = jax.random.normal(k2, (B2, L2), dtype=jnp.float32)
    out2 = jax.block_until_ready(smooth(x2, k2size, tb=8))
    ref2 = _reference(x2, k2size)
    assert out2.shape == (B2, L2 - k2size + 1), out2.shape
    assert jnp.allclose(out2, ref2, rtol=1e-6, atol=1e-6)

    print("KERNEL_OK")
</pallas_src>

<mosaic_0001>
module attributes {stable_mosaic.version = 11 : i64} {
  func.func @kernel(%arg0: i32, %arg1: memref<4x64xf32, #tpu.memory_space<vmem>>, %arg2: memref<4x60xf32, #tpu.memory_space<vmem>>) attributes {dimension_semantics = [#tpu.dimension_semantics<parallel>], iteration_bounds = array<i64: 1>, scalar_prefetch = 0 : i64, scratch_operands = 0 : i64, tpu.core_type = #tpu.core_type<tc>, window_params = [{transform_indices = @transform_0, window_bounds = array<i64: 4, 64>}, {transform_indices = @transform_1, window_bounds = array<i64: 4, 60>}]} {
    %c0 = arith.constant 0 : index
    %c0_0 = arith.constant 0 : index
    %0 = vector.load %arg1[%c0, %c0_0] : memref<4x64xf32, #tpu.memory_space<vmem>>, vector<4x60xf32>
    %c0_1 = arith.constant 0 : index
    %c1 = arith.constant 1 : index
    %1 = vector.load %arg1[%c0_1, %c1] : memref<4x64xf32, #tpu.memory_space<vmem>>, vector<4x60xf32>
    %2 = arith.addf %0, %1 : vector<4x60xf32>
    %c0_2 = arith.constant 0 : index
    %c2 = arith.constant 2 : index
    %3 = vector.load %arg1[%c0_2, %c2] : memref<4x64xf32, #tpu.memory_space<vmem>>, vector<4x60xf32>
    %4 = arith.addf %2, %3 : vector<4x60xf32>
    %c0_3 = arith.constant 0 : index
    %c3 = arith.constant 3 : index
    %5 = vector.load %arg1[%c0_3, %c3] : memref<4x64xf32, #tpu.memory_space<vmem>>, vector<4x60xf32>
    %6 = arith.addf %4, %5 : vector<4x60xf32>
    %c0_4 = arith.constant 0 : index
    %c4 = arith.constant 4 : index
    %7 = vector.load %arg1[%c0_4, %c4] : memref<4x64xf32, #tpu.memory_space<vmem>>, vector<4x60xf32>
    %8 = arith.addf %6, %7 : vector<4x60xf32>
    %cst = arith.constant 2.000000e-01 : f32
    %9 = vector.broadcast %cst : f32 to vector<4x60xf32>
    %10 = arith.mulf %8, %9 : vector<4x60xf32>
    %c0_5 = arith.constant 0 : index
    %c0_6 = arith.constant 0 : index
    %11 = vector.load %arg2[%c0_5, %c0_6] : memref<4x60xf32, #tpu.memory_space<vmem>>, vector<4x60xf32>
    tpu.vector_store %arg2[%c0_5, %c0_6], %10 {strides = array<i32>} : memref<4x60xf32, #tpu.memory_space<vmem>>, vector<4x60xf32>,
    return
  }
  func.func @transform_0(%arg0: i32) -> (i32, i32) {
    %c0_i32 = arith.constant 0 : i32
    %c0_i32_0 = arith.constant 0 : i32
    return %arg0, %c0_i32 : i32, i32
  }
  func.func @transform_1(%arg0: i32) -> (i32, i32) {
    %c0_i32 = arith.constant 0 : i32
    %c0_i32_0 = arith.constant 0 : i32
    return %arg0, %c0_i32 : i32, i32
  }
}

</mosaic_0001>

<llo_original>
// kernel: smooth.1
$region0: #{smooth.1}
  #allocation0 [shape = 'u32[]', space=smem, size = 0x4, offset = 0x4, fixed_abs, tag = 'smem constant byte address 0x4 - core index']
  #allocation1 [shape = 'u32[144,128]{1,0:T(1,128)}', space=vmem, size = 0x12000, scoped, tag = 'internal scratch']
  %s0 = inlined_call_operand.hbm [shape: f32[4,64], index: 0, kind: input, shape index: {}]
  %s1 = inlined_call_operand.hbm [shape: f32[4,60], index: 1, kind: output, shape index: {}]
  %s2 = sld [smem:[#allocation0]]
  $region18: #{smooth.1} parent=0
    _
  %s4 = ssub.s32 1, %s2
  %s5 = scalar_select 0, %s4, %s2
  $region1: #{smooth.1} parent=0
    #allocation2 [shape = 'u8[2048]{0}', space=vmem, size = 0x800, scoped, tag = 'input window, operand 0, single buffered']
    #allocation3 [shape = 's32[1]{0}', space=sflag, size = 0x4, scoped, tag = 'scoped memory for smooth.1']
    #allocation4 [shape = 's32[1]{0}', space=sflag, size = 0x4, scoped, tag = 'scoped memory for smooth.1']
    #allocation5 [shape = 'u8[2048]{0}', space=vmem, size = 0x800, scoped, tag = 'output window, operand 0, single buffered']
    %6 = vsyncpa [#allocation3], 0
    %7 = vsyncpa [#allocation4], 0
    // Predicated region
    $region2: #{smooth.1} parent=1 // pred_check
      _
    $region3: #{smooth.1} parent=1 // pred_check_branch
      %9 = sbr.rel (0) target = $region5
    $region4: #{smooth.1} parent=1 // pred_region
      %s11 = ssub.s32 64, 64
      %12 = vsyncadd [#allocation3], %s11
      %s14 = sshll.u32 [#allocation2], 4
      %s15 = int_to_ptr.vmem [resolvable:$true] %s14
      %17 = dma.hbm_to_vmem [thread:$0]  %s0, 64, %s15, [#allocation3]
    $region5: #{smooth.1} parent=1 // pred_fallthru
      _
    // Predicated region
    $region6: #{smooth.1} parent=1 // pred_check
      _
    $region7: #{smooth.1} parent=1 // pred_check_branch
      %19 = sbr.rel (0) target = $region9
    $region8: #{smooth.1} parent=1 // pred_region
      %20 = dma.done [#allocation3], 64
    $region9: #{smooth.1} parent=1 // pred_fallthru
      _
    %v21 = vld [vmem:[#allocation2] sm:$0xf]
    %23 = vrot.lane.b32.xlu0 %v21, 127
    %v24 = vpop.permute.xlu0 %23
    %v26 = vadd.f32 %v21, %v24
    %27 = vrot.lane.b32.xlu0 %v21, 126
    %v28 = vpop.permute.xlu0 %27
    %v30 = vadd.f32 %v26, %v28
    %31 = vrot.lane.b32.xlu0 %v21, 125
    %v32 = vpop.permute.xlu0 %31
    %v34 = vadd.f32 %v30, %v32
    %35 = vrot.lane.b32.xlu0 %v21, 124
    %v36 = vpop.permute.xlu0 %35
    %v38 = vadd.f32 %v34, %v36
    %v39 = vmul.f32 %v38, 0.2
    %vm40 = vcmask 486400
    %41 = vst.msk [vmem:[#allocation5] sm:$0xf] %vm40, %v39
    // Predicated region
    $region10: #{smooth.1} parent=1 // pred_check
      _
    $region11: #{smooth.1} parent=1 // pred_check_branch
      %43 = sbr.rel (0) target = $region13
    $region12: #{smooth.1} parent=1 // pred_region
      %s45 = ssub.s32 64, 64
      %46 = vsyncadd [#allocation4], %s45
      %s48 = sshll.u32 [#allocation5], 4
      %s49 = int_to_ptr.vmem [resolvable:$true] %s48
      %51 = dma.vmem_to_hbm [thread:$0]  %s49, 64, %s1, [#allocation4]
    $region13: #{smooth.1} parent=1 // pred_fallthru
      _
    // Predicated region
    $region14: #{smooth.1} parent=1 // pred_check
      _
    $region15: #{smooth.1} parent=1 // pred_check_branch
      %53 = sbr.rel (0) target = $region17
    $region16: #{smooth.1} parent=1 // pred_region
      %54 = dma.done [#allocation4], 64
    $region17: #{smooth.1} parent=1 // pred_fallthru
      _
    %55 = vsyncpa [#allocation3], 1
    %56 = vsyncpa [#allocation4], 1

</llo_original>
